<compile_context>
chip_gen: v5e
topology: v5e:2x2
jax: 0.10.0
libtpu: 0.0.40
codegen_flags: <defaults>
</compile_context>

<pallas_src>
import jax
import jax.numpy as jnp
from jax.experimental import pallas as pl
from jax.experimental.pallas import tpu as pltpu


def _round_up(x, m):
    return ((x + m - 1) // m) * m


def _critic_kernel(s_ref, a_ref, w1s_ref, w1a_ref, b1_ref, w2_ref, b2_ref,
                   w3_ref, b3_ref, o_ref):
    # Activations arrive f32; cast to bf16 in-register (no wrapper HBM roundtrip).
    s_bf = s_ref[...].astype(jnp.bfloat16)
    a_bf = a_ref[...].astype(jnp.bfloat16)

    # Layer 1: fused "concat" via split weights. bf16 MXU operands, f32
    # accumulation; bias + ReLU + bf16-cast fused so only the bf16 (tm, 512)
    # intermediate is materialized (epilogue math stays f32 -> v5e safe).
    h1 = jnp.maximum(
        jnp.dot(s_bf, w1s_ref[...], preferred_element_type=jnp.float32)
        + jnp.dot(a_bf, w1a_ref[...], preferred_element_type=jnp.float32)
        + b1_ref[...],
        0.0,
    ).astype(jnp.bfloat16)

    # Layer 2: (tm, 512) x (512, 256) on the MXU, f32 epilogue.
    h2 = jnp.maximum(
        jnp.dot(h1, w2_ref[...], preferred_element_type=jnp.float32) + b2_ref[...],
        0.0,
    )

    # Layer 3: N=1 matmul as VPU multiply + XLU lane reduction, then written as
    # a lane-dense (1, 1, tm) row (unmasked full-width store, contiguous DMA).
    row = jnp.sum(h2 * w3_ref[...], axis=-1) + b3_ref[0, 0]        # (tm,) f32
    o_ref[...] = row[None, None, :].astype(o_ref.dtype)            # (1, 1, tm)


def _choose_tm(batch):
    if batch <= 128:
        # Single tile; multiple of 16 so bf16 MXU operands pack sublane pairs.
        return _round_up(max(batch, 1), 16)
    # Large tiles amortize per-grid-step overhead; >= 2 steps so the "parallel"
    # batch axis can shard over both v7x TensorCores; cap 2048 keeps the VMEM
    # footprint at a few MB (fine even on v7x's 64 MiB).
    return min(2048, _round_up(pl.cdiv(batch, 2), 16))


def critic_forward(states, actions, params, *, tm=None):
    """Pallas forward pass of Critic. states: (B, S), actions: (B, A) -> (B, 1)."""
    w1_s, w1_a, b1, w2, b2, w3, b3 = params
    B, S = states.shape
    A = actions.shape[1]
    d_in = S + A

    if tm is None:
        tm = _choose_tm(B)
    else:
        tm = _round_up(max(tm, 16), 16)   # enforce bf16-friendly (16, 128) tiles

    # Only pad when the whole batch is smaller than one tile (tiny copy).
    # Otherwise the ragged last block just reads out-of-bounds rows; rows are
    # independent and those outputs are sliced off below.
    if B < tm:
        pad = tm - B
        states = jnp.pad(states, ((0, pad), (0, 0)))
        actions = jnp.pad(actions, ((0, pad), (0, 0)))
    rows = max(B, tm)
    num_tiles = pl.cdiv(rows, tm)

    # Defensive one-time dtype handling (no-ops when params were prepared).
    def _bf16(x):
        return x if x.dtype == jnp.bfloat16 else x.astype(jnp.bfloat16)

    def _f32(x):
        return x if x.dtype == jnp.float32 else x.astype(jnp.float32)

    w1_s, w1_a, w2 = _bf16(w1_s), _bf16(w1_a), _bf16(w2)
    b1, b2, w3, b3 = _f32(b1), _f32(b2), _f32(w3), _f32(b3)

    flops = 2 * num_tiles * tm * (d_in * 512 + 512 * 256 + 256)
    bytes_accessed = (
        4 * (states.size + actions.size)          # f32 activations
        + 2 * (w1_s.size + w1_a.size + w2.size)   # bf16 weights
        + 4 * (b1.size + b2.size + w3.size + b3.size)
        + 4 * num_tiles * tm                      # f32 output
    )
    cost = pl.CostEstimate(flops=int(flops), transcendentals=0,
                           bytes_accessed=int(bytes_accessed))

    out = pl.pallas_call(
        _critic_kernel,
        out_shape=jax.ShapeDtypeStruct((num_tiles, 1, tm), jnp.float32),
        grid=(num_tiles,),
        in_specs=[
            pl.BlockSpec((tm, S), lambda i: (i, 0)),        # states (f32)
            pl.BlockSpec((tm, A), lambda i: (i, 0)),        # actions (f32)
            pl.BlockSpec((S, 512), lambda i: (0, 0)),       # w1_s (bf16, resident)
            pl.BlockSpec((A, 512), lambda i: (0, 0)),       # w1_a (bf16, resident)
            pl.BlockSpec((1, 512), lambda i: (0, 0)),       # b1 (f32)
            pl.BlockSpec((512, 256), lambda i: (0, 0)),     # w2 (bf16, resident)
            pl.BlockSpec((1, 256), lambda i: (0, 0)),       # b2 (f32)
            pl.BlockSpec((1, 256), lambda i: (0, 0)),       # w3 row (f32)
            pl.BlockSpec(memory_space=pltpu.MemorySpace.SMEM),  # b3 scalar
        ],
        out_specs=pl.BlockSpec((1, 1, tm), lambda i: (i, 0, 0)),  # lane-dense rows
        compiler_params=pltpu.CompilerParams(
            dimension_semantics=("parallel",),
            vmem_limit_bytes=40 * 1024 * 1024,
        ),
        cost_estimate=cost,
    )(states, actions, w1_s, w1_a, b1, w2, b2, w3, b3)

    return out.reshape(-1)[:B].reshape(B, 1)


def init_critic_params(key, total_state_dim, total_action_dim):
    """Init mimicking PyTorch nn.Linear default (U[-1/sqrt(fan_in), +]).

    Returns f32 params in kernel-friendly layout:
      (w1_s (S,512), w1_a (A,512), b1 (1,512), w2 (512,256), b2 (1,256),
       w3 (1,256) lane-dense row, b3 (1,1)).
    """
    d_in = total_state_dim + total_action_dim

    def linear(k, fan_in, fan_out):
        kw, kb = jax.random.split(k)
        bound = 1.0 / (fan_in ** 0.5)
        w = jax.random.uniform(kw, (fan_in, fan_out), jnp.float32, -bound, bound)
        b = jax.random.uniform(kb, (1, fan_out), jnp.float32, -bound, bound)
        return w, b

    k1, k2, k3 = jax.random.split(key, 3)
    w1, b1 = linear(k1, d_in, 512)
    w2, b2 = linear(k2, 512, 256)
    w3, b3 = linear(k3, 256, 1)

    w1_s = w1[:total_state_dim]
    w1_a = w1[total_state_dim:]
    return (w1_s, w1_a, b1, w2, b2, w3.T, b3.reshape(1, 1))


def prepare_params(params):
    """One-time cast of MXU weights to bf16 (biases / w3 / b3 stay f32)."""
    w1_s, w1_a, b1, w2, b2, w3, b3 = params
    return (w1_s.astype(jnp.bfloat16), w1_a.astype(jnp.bfloat16), b1,
            w2.astype(jnp.bfloat16), b2, w3, b3)


def critic_reference_f32(states, actions, params):
    """Pure-JAX f32 reference (PyTorch semantics)."""
    w1_s, w1_a, b1, w2, b2, w3, b3 = [jnp.asarray(p, jnp.float32) for p in params]
    x = jnp.concatenate([states, actions], axis=1)
    w1 = jnp.concatenate([w1_s, w1_a], axis=0)
    h1 = jnp.maximum(x @ w1 + b1, 0.0)
    h2 = jnp.maximum(h1 @ w2 + b2, 0.0)
    return h2 @ w3.T + b3


def critic_reference_mixed(states, actions, params):
    """Pure-JAX reference with the kernel's bf16-operand / f32-accumulate recipe."""
    w1_s, w1_a, b1, w2, b2, w3, b3 = params
    bf = jnp.bfloat16
    h1 = (jnp.dot(states.astype(bf), w1_s.astype(bf),
                  preferred_element_type=jnp.float32)
          + jnp.dot(actions.astype(bf), w1_a.astype(bf),
                    preferred_element_type=jnp.float32)
          + b1.astype(jnp.float32))
    h1 = jnp.maximum(h1, 0.0)
    h2 = jnp.dot(h1.astype(bf), w2.astype(bf),
                 preferred_element_type=jnp.float32) + b2.astype(jnp.float32)
    h2 = jnp.maximum(h2, 0.0)
    return (jnp.sum(h2 * w3.astype(jnp.float32), axis=-1, keepdims=True)
            + b3.astype(jnp.float32)[0, 0])


if __name__ == "__main__":
    key = jax.random.PRNGKey(0)
    k_params, k_states, k_actions = jax.random.split(key, 3)

    batch = 8
    total_state_dim = 12
    total_action_dim = 4

    params_f32 = init_critic_params(k_params, total_state_dim, total_action_dim)
    params = prepare_params(params_f32)   # bf16 weight cast happens ONCE here

    states = jax.random.normal(k_states, (batch, total_state_dim), jnp.float32)
    actions = jax.random.normal(k_actions, (batch, total_action_dim), jnp.float32)

    out = jax.block_until_ready(critic_forward(states, actions, params))
    assert out.shape == (batch, 1), out.shape

    # Tight check against a reference using the identical mixed-precision recipe.
    ref_mixed = critic_reference_mixed(states, actions, params)
    assert jnp.allclose(out, ref_mixed, atol=2e-3, rtol=2e-3), "mismatch vs mixed ref"

    # Loose check against the full-f32 PyTorch-semantics reference (bf16 MXU
    # operands introduce ~0.5% error).
    ref_f32 = critic_reference_f32(states, actions, params_f32)
    assert jnp.allclose(out, ref_f32, atol=5e-2, rtol=5e-2), "mismatch vs f32 ref"

    # Second case: ragged batch (B not a multiple of tm) exercising the
    # multi-step grid + out-of-bounds last block path.
    batch2 = 200
    s2 = jax.random.normal(jax.random.PRNGKey(1), (batch2, total_state_dim), jnp.float32)
    a2 = jax.random.normal(jax.random.PRNGKey(2), (batch2, total_action_dim), jnp.float32)
    out2 = jax.block_until_ready(critic_forward(s2, a2, params))
    assert out2.shape == (batch2, 1), out2.shape
    ref2 = critic_reference_mixed(s2, a2, params)
    assert jnp.allclose(out2, ref2, atol=2e-3, rtol=2e-3), "mismatch vs mixed ref (B=200)"

    print("KERNEL_OK")
</pallas_src>

<mosaic_0001>
module attributes {stable_mosaic.version = 11 : i64} {
  func.func @_critic_kernel(%arg0: i32, %arg1: memref<16x12xf32, #tpu.memory_space<vmem>>, %arg2: memref<16x4xf32, #tpu.memory_space<vmem>>, %arg3: memref<12x512xbf16, #tpu.memory_space<vmem>>, %arg4: memref<4x512xbf16, #tpu.memory_space<vmem>>, %arg5: memref<1x512xf32, #tpu.memory_space<vmem>>, %arg6: memref<512x256xbf16, #tpu.memory_space<vmem>>, %arg7: memref<1x256xf32, #tpu.memory_space<vmem>>, %arg8: memref<1x256xf32, #tpu.memory_space<vmem>>, %arg9: memref<1x1xf32, #tpu.memory_space<smem>>, %arg10: memref<1x1x16xf32, #tpu.memory_space<vmem>>) attributes {dimension_semantics = [#tpu.dimension_semantics<parallel>], iteration_bounds = array<i64: 1>, scalar_prefetch = 0 : i64, scratch_operands = 0 : i64, tpu.core_type = #tpu.core_type<tc>, window_params = [{transform_indices = @transform_0, window_bounds = array<i64: 16, 12>}, {transform_indices = @transform_1, window_bounds = array<i64: 16, 4>}, {pipeline_mode = #tpu.pipeline_mode<synchronous>, transform_indices = @transform_2, window_bounds = array<i64: 12, 512>}, {pipeline_mode = #tpu.pipeline_mode<synchronous>, transform_indices = @transform_3, window_bounds = array<i64: 4, 512>}, {pipeline_mode = #tpu.pipeline_mode<synchronous>, transform_indices = @transform_4, window_bounds = array<i64: 1, 512>}, {pipeline_mode = #tpu.pipeline_mode<synchronous>, transform_indices = @transform_5, window_bounds = array<i64: 512, 256>}, {pipeline_mode = #tpu.pipeline_mode<synchronous>, transform_indices = @transform_6, window_bounds = array<i64: 1, 256>}, {pipeline_mode = #tpu.pipeline_mode<synchronous>, transform_indices = @transform_7, window_bounds = array<i64: 1, 256>}, {transform_indices = @transform_8, window_bounds = array<i64: 1, 1>}, {transform_indices = @transform_9, window_bounds = array<i64: 1, 1, 16>}]} {
    %c0 = arith.constant 0 : index
    %c0_0 = arith.constant 0 : index
    %0 = vector.load %arg1[%c0, %c0_0] : memref<16x12xf32, #tpu.memory_space<vmem>>, vector<16x12xf32>
    %1 = arith.truncf %0 : vector<16x12xf32> to vector<16x12xbf16>
    %c0_1 = arith.constant 0 : index
    %c0_2 = arith.constant 0 : index
    %2 = vector.load %arg2[%c0_1, %c0_2] : memref<16x4xf32, #tpu.memory_space<vmem>>, vector<16x4xf32>
    %3 = arith.truncf %2 : vector<16x4xf32> to vector<16x4xbf16>
    %c0_3 = arith.constant 0 : index
    %c0_4 = arith.constant 0 : index
    %4 = vector.load %arg3[%c0_3, %c0_4] : memref<12x512xbf16, #tpu.memory_space<vmem>>, vector<12x512xbf16>
    %cst = arith.constant dense<0.000000e+00> : vector<16x512xf32>
    %5 = tpu.matmul %1, %4, %cst {dimension_numbers = #tpu.dot_dimension_numbers<[1], [0], [0], [1], [0, 0, 1, 1], [], []>} : vector<16x12xbf16>, vector<12x512xbf16>, vector<16x512xf32> -> vector<16x512xf32>
    %c0_5 = arith.constant 0 : index
    %c0_6 = arith.constant 0 : index
    %6 = vector.load %arg4[%c0_5, %c0_6] : memref<4x512xbf16, #tpu.memory_space<vmem>>, vector<4x512xbf16>
    %cst_7 = arith.constant dense<0.000000e+00> : vector<16x512xf32>
    %7 = tpu.matmul %3, %6, %cst_7 {dimension_numbers = #tpu.dot_dimension_numbers<[1], [0], [0], [1], [0, 0, 1, 1], [], []>} : vector<16x4xbf16>, vector<4x512xbf16>, vector<16x512xf32> -> vector<16x512xf32>
    %8 = arith.addf %5, %7 : vector<16x512xf32>
    %c0_8 = arith.constant 0 : index
    %c0_9 = arith.constant 0 : index
    %9 = vector.load %arg5[%c0_8, %c0_9] : memref<1x512xf32, #tpu.memory_space<vmem>>, vector<1x512xf32>
    %10 = vector.broadcast %9 : vector<1x512xf32> to vector<16x512xf32>
    %11 = arith.addf %8, %10 : vector<16x512xf32>
    %cst_10 = arith.constant 0.000000e+00 : f32
    %12 = vector.broadcast %cst_10 : f32 to vector<16x512xf32>
    %13 = arith.maximumf %11, %12 : vector<16x512xf32>
    %14 = arith.truncf %13 : vector<16x512xf32> to vector<16x512xbf16>
    %c0_11 = arith.constant 0 : index
    %c0_12 = arith.constant 0 : index
    %15 = vector.load %arg6[%c0_11, %c0_12] : memref<512x256xbf16, #tpu.memory_space<vmem>>, vector<512x256xbf16>
    %cst_13 = arith.constant dense<0.000000e+00> : vector<16x256xf32>
    %16 = tpu.matmul %14, %15, %cst_13 {dimension_numbers = #tpu.dot_dimension_numbers<[1], [0], [0], [1], [0, 0, 1, 1], [], []>} : vector<16x512xbf16>, vector<512x256xbf16>, vector<16x256xf32> -> vector<16x256xf32>
    %c0_14 = arith.constant 0 : index
    %c0_15 = arith.constant 0 : index
    %17 = vector.load %arg7[%c0_14, %c0_15] : memref<1x256xf32, #tpu.memory_space<vmem>>, vector<1x256xf32>
    %18 = vector.broadcast %17 : vector<1x256xf32> to vector<16x256xf32>
    %19 = arith.addf %16, %18 : vector<16x256xf32>
    %cst_16 = arith.constant 0.000000e+00 : f32
    %20 = vector.broadcast %cst_16 : f32 to vector<16x256xf32>
    %21 = arith.maximumf %19, %20 : vector<16x256xf32>
    %c0_17 = arith.constant 0 : index
    %c0_18 = arith.constant 0 : index
    %22 = vector.load %arg8[%c0_17, %c0_18] : memref<1x256xf32, #tpu.memory_space<vmem>>, vector<1x256xf32>
    %23 = vector.broadcast %22 : vector<1x256xf32> to vector<16x256xf32>
    %24 = arith.mulf %21, %23 : vector<16x256xf32>
    %cst_19 = arith.constant dense<0.000000e+00> : vector<16xf32>
    %25 = vector.multi_reduction <add>, %24, %cst_19 [1] : vector<16x256xf32> to vector<16xf32>
    %c0_20 = arith.constant 0 : index
    %c0_21 = arith.constant 0 : index
    %26 = memref.load %arg9[%c0_20, %c0_21] : memref<1x1xf32, #tpu.memory_space<smem>>
    %27 = vector.broadcast %26 : f32 to vector<16xf32>
    %28 = arith.addf %25, %27 : vector<16xf32>
    %29 = vector.shape_cast %28 : vector<16xf32> to vector<1x1x16xf32>
    %c0_22 = arith.constant 0 : index
    %c0_23 = arith.constant 0 : index
    %c0_24 = arith.constant 0 : index
    %30 = vector.load %arg10[%c0_22, %c0_23, %c0_24] : memref<1x1x16xf32, #tpu.memory_space<vmem>>, vector<1x1x16xf32>
    tpu.vector_store %arg10[%c0_22, %c0_23, %c0_24], %29 {strides = array<i32>} : memref<1x1x16xf32, #tpu.memory_space<vmem>>, vector<1x1x16xf32>,
    return
  }
  func.func @transform_0(%arg0: i32) -> (i32, i32) {
    %c0_i32 = arith.constant 0 : i32
    %c0_i32_0 = arith.constant 0 : i32
    return %arg0, %c0_i32 : i32, i32
  }
  func.func @transform_1(%arg0: i32) -> (i32, i32) {
    %c0_i32 = arith.constant 0 : i32
    %c0_i32_0 = arith.constant 0 : i32
    return %arg0, %c0_i32 : i32, i32
  }
  func.func @transform_2(%arg0: i32) -> (i32, i32) {
    %c0_i32 = arith.constant 0 : i32
    %c0_i32_0 = arith.constant 0 : i32
    %c0_i32_1 = arith.constant 0 : i32
    return %c0_i32, %c0_i32_0 : i32, i32
  }
  func.func @transform_3(%arg0: i32) -> (i32, i32) {
    %c0_i32 = arith.constant 0 : i32
    %c0_i32_0 = arith.constant 0 : i32
    %c0_i32_1 = arith.constant 0 : i32
    return %c0_i32, %c0_i32_0 : i32, i32
  }
  func.func @transform_4(%arg0: i32) -> (i32, i32) {
    %c0_i32 = arith.constant 0 : i32
    %c0_i32_0 = arith.constant 0 : i32
    %c0_i32_1 = arith.constant 0 : i32
    return %c0_i32, %c0_i32_0 : i32, i32
  }
  func.func @transform_5(%arg0: i32) -> (i32, i32) {
    %c0_i32 = arith.constant 0 : i32
    %c0_i32_0 = arith.constant 0 : i32
    %c0_i32_1 = arith.constant 0 : i32
    return %c0_i32, %c0_i32_0 : i32, i32
  }
  func.func @transform_6(%arg0: i32) -> (i32, i32) {
    %c0_i32 = arith.constant 0 : i32
    %c0_i32_0 = arith.constant 0 : i32
    %c0_i32_1 = arith.constant 0 : i32
    return %c0_i32, %c0_i32_0 : i32, i32
  }
  func.func @transform_7(%arg0: i32) -> (i32, i32) {
    %c0_i32 = arith.constant 0 : i32
    %c0_i32_0 = arith.constant 0 : i32
    %c0_i32_1 = arith.constant 0 : i32
    return %c0_i32, %c0_i32_0 : i32, i32
  }
  func.func @transform_8(%arg0: i32) -> (i32, i32) {
    %c0_i32 = arith.constant 0 : i32
    %c0_i32_0 = arith.constant 0 : i32
    %c0_i32_1 = arith.constant 0 : i32
    return %c0_i32, %c0_i32_0 : i32, i32
  }
  func.func @transform_9(%arg0: i32) -> (i32, i32, i32) {
    %c0_i32 = arith.constant 0 : i32
    %c0_i32_0 = arith.constant 0 : i32
    %c0_i32_1 = arith.constant 0 : i32
    return %arg0, %c0_i32, %c0_i32_0 : i32, i32, i32
  }
}

</mosaic_0001>

<llo_original>
// kernel: tpu_custom_call.1
$region0: #{tpu_custom_call.1}
  #allocation0 [shape = 'u32[]', space=smem, size = 0x4, offset = 0x4, fixed_abs, tag = 'smem constant byte address 0x4 - core index']
  #allocation1 [shape = 'u32[72,128]{1,0:T(1,128)}', space=vmem, size = 0x9000, scoped, tag = 'internal scratch']
  #allocation2 [shape = 'f32[1,1]{1,0:T(1,128)S(6)}', space=smem, size = 0x200, scoped, tag = 'scoped memory for tpu_custom_call.1']
  %s0 = inlined_call_operand.vmem [shape: f32[16,12], index: 0, kind: input, shape index: {}]
  %s1 = inlined_call_operand.vmem [shape: f32[16,4], index: 1, kind: input, shape index: {}]
  %s2 = inlined_call_operand.hbm [shape: bf16[12,512], index: 2, kind: input, shape index: {}]
  %s3 = inlined_call_operand.vmem [shape: bf16[4,512], index: 3, kind: input, shape index: {}]
  %s4 = inlined_call_operand.hbm [shape: f32[1,512], index: 4, kind: input, shape index: {}]
  %s5 = inlined_call_operand.hbm [shape: bf16[512,256], index: 5, kind: input, shape index: {}]
  %s6 = inlined_call_operand.vmem [shape: f32[1,256], index: 6, kind: input, shape index: {}]
  %s7 = inlined_call_operand.vmem [shape: f32[1,256], index: 7, kind: input, shape index: {}]
  %s8 = inlined_call_operand.<no memory space> [shape: f32[1,1], index: 8, kind: input, shape index: {}]
  %s9 = inlined_call_operand.hbm [shape: f32[1,1,16], index: 9, kind: output, shape index: {}]
  %s10 = sld [smem:[#allocation0]]
  $region58: #{tpu_custom_call.1} parent=0
    _
  %s12 = ssub.s32 1, %s10
  %s13 = scalar_select 0, %s12, %s10
  %14 = sst [smem:[#allocation2]] %s8
  $region1: #{tpu_custom_call.1} parent=0
    #allocation3 [shape = 'u8[16384]{0}', space=vmem, size = 0x4000, scoped, tag = 'input window, operand 2, single buffered']
    #allocation4 [shape = 's32[1]{0}', space=sflag, size = 0x4, scoped, tag = 'scoped memory for tpu_custom_call.1']
    #allocation5 [shape = 's32[1]{0}', space=sflag, size = 0x4, scoped, tag = 'scoped memory for tpu_custom_call.1']
    #allocation6 [shape = 'u8[2048]{0}', space=vmem, size = 0x800, scoped, tag = 'input window, operand 4, single buffered']
    #allocation7 [shape = 's32[1]{0}', space=sflag, size = 0x4, scoped, tag = 'scoped memory for tpu_custom_call.1']
    #allocation8 [shape = 'u8[262144]{0}', space=vmem, size = 0x40000, scoped, tag = 'input window, operand 5, single buffered']
    #allocation9 [shape = 'u8[512]{0}', space=vmem, size = 0x400, scoped, tag = 'output window, operand 0, single buffered']
    %15 = vsyncpa [#allocation4], 0
    %16 = vsyncpa [#allocation7], 0
    %17 = vsyncpa [#allocation5], 0
    // Predicated region
    $region2: #{tpu_custom_call.1} parent=1 // pred_check
      _
    $region3: #{tpu_custom_call.1} parent=1 // pred_check_branch
      %19 = sbr.rel (0) target = $region5
    $region4: #{tpu_custom_call.1} parent=1 // pred_region
      _
    $region5: #{tpu_custom_call.1} parent=1 // pred_fallthru
      _
    // Predicated region
    $region6: #{tpu_custom_call.1} parent=1 // pred_check
      _
    $region7: #{tpu_custom_call.1} parent=1 // pred_check_branch
      %21 = sbr.rel (0) target = $region9
    $region8: #{tpu_custom_call.1} parent=1 // pred_region
      _
    $region9: #{tpu_custom_call.1} parent=1 // pred_fallthru
      _
    // Predicated region
    $region10: #{tpu_custom_call.1} parent=1 // pred_check
      _
    $region11: #{tpu_custom_call.1} parent=1 // pred_check_branch
      %23 = sbr.rel (0) target = $region13
    $region12: #{tpu_custom_call.1} parent=1 // pred_region
      %25 = vsyncadd [#allocation4], 0
      %s26 = sshll.u32 %s2, 4
      %s27 = int_to_ptr.hbm [resolvable:$true] %s26
      %s28 = sshll.u32 [#allocation3], 4
      %s29 = int_to_ptr.vmem [resolvable:$true] %s28
      %34 = dma.hbm_to_vmem [thread:$0]  %s27, 512, %s29, [#allocation4], 256, 256, 16
    $region13: #{tpu_custom_call.1} parent=1 // pred_fallthru
      _
    // Predicated region
    $region14: #{tpu_custom_call.1} parent=1 // pred_check
      _
    $region15: #{tpu_custom_call.1} parent=1 // pred_check_branch
      %36 = sbr.rel (0) target = $region17
    $region16: #{tpu_custom_call.1} parent=1 // pred_region
      _
    $region17: #{tpu_custom_call.1} parent=1 // pred_fallthru
      _
    // Predicated region
    $region18: #{tpu_custom_call.1} parent=1 // pred_check
      _
    $region19: #{tpu_custom_call.1} parent=1 // pred_check_branch
      %38 = sbr.rel (0) target = $region21
    $region20: #{tpu_custom_call.1} parent=1 // pred_region
      %40 = vsyncadd [#allocation7], 0
      %s42 = sshll.u32 %s4, 4
      %s43 = int_to_ptr.hbm [resolvable:$true] %s42
      %s44 = sshll.u32 [#allocation6], 4
      %s45 = int_to_ptr.vmem [resolvable:$true] %s44
      %47 = dma.hbm_to_vmem [thread:$0]  %s43, 64, %s45, [#allocation7]
    $region21: #{tpu_custom_call.1} parent=1 // pred_fallthru
      _
    // Predicated region
    $region22: #{tpu_custom_call.1} parent=1 // pred_check
      _
    $region23: #{tpu_custom_call.1} parent=1 // pred_check_branch
      %49 = sbr.rel (0) target = $region25
    $region24: #{tpu_custom_call.1} parent=1 // pred_region
      %51 = vsyncadd [#allocation7], 0
      %s52 = sshll.u32 %s5, 4
      %s53 = int_to_ptr.hbm [resolvable:$true] %s52
      %s54 = sshll.u32 [#allocation8], 4
      %s55 = int_to_ptr.vmem [resolvable:$true] %s54
      %60 = dma.hbm_to_vmem [thread:$0]  %s53, 8192, %s55, [#allocation7], 128, 128, 8
    $region25: #{tpu_custom_call.1} parent=1 // pred_fallthru
      _
    // Predicated region
    $region26: #{tpu_custom_call.1} parent=1 // pred_check
      _
    $region27: #{tpu_custom_call.1} parent=1 // pred_check_branch
      %62 = sbr.rel (0) target = $region29
    $region28: #{tpu_custom_call.1} parent=1 // pred_region
      _
    $region29: #{tpu_custom_call.1} parent=1 // pred_fallthru
      _
    // Predicated region
    $region30: #{tpu_custom_call.1} parent=1 // pred_check
      _
    $region31: #{tpu_custom_call.1} parent=1 // pred_check_branch
      %64 = sbr.rel (0) target = $region33
    $region32: #{tpu_custom_call.1} parent=1 // pred_region
      _
    $region33: #{tpu_custom_call.1} parent=1 // pred_fallthru
      _
    // Predicated region
    $region34: #{tpu_custom_call.1} parent=1 // pred_check
      _
    $region35: #{tpu_custom_call.1} parent=1 // pred_check_branch
      %66 = sbr.rel (0) target = $region37
    $region36: #{tpu_custom_call.1} parent=1 // pred_region
      _
    $region37: #{tpu_custom_call.1} parent=1 // pred_fallthru
      _
    // Predicated region
    $region38: #{tpu_custom_call.1} parent=1 // pred_check
      _
    $region39: #{tpu_custom_call.1} parent=1 // pred_check_branch
      %68 = sbr.rel (0) target = $region41
    $region40: #{tpu_custom_call.1} parent=1 // pred_region
      %70 = dma.done [#allocation4], 512
    $region41: #{tpu_custom_call.1} parent=1 // pred_fallthru
      _
    // Predicated region
    $region42: #{tpu_custom_call.1} parent=1 // pred_check
      _
    $region43: #{tpu_custom_call.1} parent=1 // pred_check_branch
      %72 = sbr.rel (0) target = $region45
    $region44: #{tpu_custom_call.1} parent=1 // pred_region
      %74 = dma.done [#allocation7], 64
    $region45: #{tpu_custom_call.1} parent=1 // pred_fallthru
      _
    // Predicated region
    $region46: #{tpu_custom_call.1} parent=1 // pred_check
      _
    $region47: #{tpu_custom_call.1} parent=1 // pred_check_branch
      %76 = sbr.rel (0) target = $region49
    $region48: #{tpu_custom_call.1} parent=1 // pred_region
      %78 = dma.done [#allocation7], 8192
    $region49: #{tpu_custom_call.1} parent=1 // pred_fallthru
      _
    %v80 = vld [vmem:[%s0] sm:$0xff]
    %v81 = vld [vmem:[%s0 + $0x8] sm:$0xff]
    %v82 = vpack.c.bf16 %v81, %v80
    %v83 = vld [vmem:[%s1] sm:$0xff]
    %v84 = vld [vmem:[%s1 + $0x8] sm:$0xff]
    %v85 = vpack.c.bf16 %v84, %v83
    %v86 = vld [vmem:[#allocation3] sm:$0xff]
    %v87 = vld [vmem:[#allocation3 + $0x8] sm:$0xff]
    %v88 = vld [vmem:[#allocation3 + $0x10] sm:$0x33]
    %v89 = vld [vmem:[#allocation3 + $0x18] sm:$0x33]
    %v90 = vld [vmem:[%s3] sm:$0xff]
    %92 = vst [vmem:[#allocation1] ss:$4 sm:$0xff] %v90
    %v93 = vld.sshfl [vmem:[#allocation1] sm:$0xff pattern:$0x73625140]
    %v94 = vld.sshfl [vmem:[#allocation1 + $0x8] sm:$0xff pattern:$0x73625140]
    %v95 = vld.sshfl [vmem:[#allocation1 + $0x10] sm:$0xff pattern:$0x73625140]
    %v96 = vld.sshfl [vmem:[#allocation1 + $0x18] sm:$0xff pattern:$0x73625140]
    %vm97 = vcmask 31744
    %v99 = vsel %vm97, %v85, 0
    %vm101 = vcmask 1041408
    %v102 = vsel %vm101, %v93, 0
    %v104 = vsel %vm101, %v94, 0
    %v106 = vsel %vm101, %v95, 0
    %v108 = vsel %vm101, %v96, 0
    %110 = vmatpush.bf16.msra.mxu0 0
    %111 = vmatpush.bf16.msra.mxu0 0
    %112 = vmatpush.bf16.msra.mxu0 0
    %113 = vmatpush.bf16.msra.mxu0 0
    %114 = vmatpush.bf16.msra.mxu0 0
    %115 = vmatpush.bf16.msra.mxu0 0
    %116 = vmatpush.bf16.msra.mxu0 0
    %117 = vmatpush.bf16.msra.mxu0 %v102
    %118 = vmatmul.bf16.gmra.mxu0 %v99
    %v119 = vpop.f32.mrf.mxu0
    %v120 = vadd.f32 0.0, %v119
    %v121 = vpop.f32.mrf.mxu0
    %v122 = vadd.f32 0.0, %v121
    %123 = vdwg.mxu0
    %124 = vmatpush.bf16.msra.mxu0 0
    %125 = vmatpush.bf16.msra.mxu0 0
    %126 = vmatpush.bf16.msra.mxu0 0
    %127 = vmatpush.bf16.msra.mxu0 0
    %128 = vmatpush.bf16.msra.mxu0 0
    %129 = vmatpush.bf16.msra.mxu0 0
    %130 = vmatpush.bf16.msra.mxu0 0
    %131 = vmatpush.bf16.msra.mxu0 %v104
    %132 = vmatmul.bf16.gmra.mxu0 %v99
    %v133 = vpop.f32.mrf.mxu0
    %v134 = vadd.f32 0.0, %v133
    %v135 = vpop.f32.mrf.mxu0
    %v136 = vadd.f32 0.0, %v135
    %137 = vdwg.mxu0
    %138 = vmatpush.bf16.msra.mxu0 0
    %139 = vmatpush.bf16.msra.mxu0 0
    %140 = vmatpush.bf16.msra.mxu0 0
    %141 = vmatpush.bf16.msra.mxu0 0
    %142 = vmatpush.bf16.msra.mxu0 0
    %143 = vmatpush.bf16.msra.mxu0 0
    %144 = vmatpush.bf16.msra.mxu0 0
    %145 = vmatpush.bf16.msra.mxu0 %v106
    %146 = vmatmul.bf16.gmra.mxu0 %v99
    %v147 = vpop.f32.mrf.mxu0
    %v148 = vadd.f32 0.0, %v147
    %v149 = vpop.f32.mrf.mxu0
    %v150 = vadd.f32 0.0, %v149
    %151 = vdwg.mxu0
    %152 = vmatpush.bf16.msra.mxu0 0
    %153 = vmatpush.bf16.msra.mxu0 0
    %154 = vmatpush.bf16.msra.mxu0 0
    %155 = vmatpush.bf16.msra.mxu0 0
    %156 = vmatpush.bf16.msra.mxu0 0
    %157 = vmatpush.bf16.msra.mxu0 0
    %158 = vmatpush.bf16.msra.mxu0 0
    %159 = vmatpush.bf16.msra.mxu0 %v108
    %160 = vmatmul.bf16.gmra.mxu0 %v99
    %v161 = vpop.f32.mrf.mxu0
    %v162 = vadd.f32 0.0, %v161
    %v163 = vpop.f32.mrf.mxu0
    %v164 = vadd.f32 0.0, %v163
    %165 = vdwg.mxu0
    %v170 = vunpack.c.l.b16 %v86
    %v171 = vunpack.c.h.b16 %v86
    %v172 = vunpack.c.l.b16 %v87
    %v173 = vunpack.c.h.b16 %v87
    %v174 = vunpack.c.l.b16 %v88
    %v175 = vunpack.c.h.b16 %v88
    %v176 = vunpack.c.l.b16 %v89
    %v177 = vunpack.c.h.b16 %v89
    %v178 = vpack.c.b16 %v174, %v170
    %v179 = vpack.c.b16 %v175, %v171
    %v180 = vpack.c.b16 %v176, %v172
    %v181 = vpack.c.b16 %v177, %v173
    %vm182 = vcmask 97280
    %v184 = vsel %vm182, %v82, 0
    %vm186 = vcmask 1045504
    %v188 = vsel %vm186, %v178, 0
    %v191 = vsel %vm186, %v179, 0
    %v194 = vsel %vm186, %v180, 0
    %v197 = vsel %vm186, %v181, 0
    %199 = vmatpush.bf16.msra.mxu0 0
    %200 = vmatpush.bf16.msra.mxu0 0
    %201 = vmatpush.bf16.msra.mxu0 0
    %202 = vmatpush.bf16.msra.mxu0 0
    %203 = vmatpush.bf16.msra.mxu0 0
    %204 = vmatpush.bf16.msra.mxu0 0
    %205 = vmatpush.bf16.msra.mxu0 0
    %206 = vmatpush.bf16.msra.mxu0 %v188
    %207 = vmatmul.bf16.gmra.mxu0 %v184
    %v208 = vpop.f32.mrf.mxu0
    %v209 = vadd.f32 %v120, %v208
    %v210 = vpop.f32.mrf.mxu0
    %v211 = vadd.f32 %v122, %v210
    %212 = vdwg.mxu0
    %213 = vmatpush.bf16.msra.mxu0 0
    %214 = vmatpush.bf16.msra.mxu0 0
    %215 = vmatpush.bf16.msra.mxu0 0
    %216 = vmatpush.bf16.msra.mxu0 0
    %217 = vmatpush.bf16.msra.mxu0 0
    %218 = vmatpush.bf16.msra.mxu0 0
    %219 = vmatpush.bf16.msra.mxu0 0
    %220 = vmatpush.bf16.msra.mxu0 %v191
    %221 = vmatmul.bf16.gmra.mxu0 %v184
    %v222 = vpop.f32.mrf.mxu0
    %v223 = vadd.f32 %v134, %v222
    %v224 = vpop.f32.mrf.mxu0
    %v225 = vadd.f32 %v136, %v224
    %226 = vdwg.mxu0
    %227 = vmatpush.bf16.msra.mxu0 0
    %228 = vmatpush.bf16.msra.mxu0 0
    %229 = vmatpush.bf16.msra.mxu0 0
    %230 = vmatpush.bf16.msra.mxu0 0
    %231 = vmatpush.bf16.msra.mxu0 0
    %232 = vmatpush.bf16.msra.mxu0 0
    %233 = vmatpush.bf16.msra.mxu0 0
    %234 = vmatpush.bf16.msra.mxu0 %v194
    %235 = vmatmul.bf16.gmra.mxu0 %v184
    %v236 = vpop.f32.mrf.mxu0
    %v237 = vadd.f32 %v148, %v236
    %v238 = vpop.f32.mrf.mxu0
    %v239 = vadd.f32 %v150, %v238
    %240 = vdwg.mxu0
    %241 = vmatpush.bf16.msra.mxu0 0
    %242 = vmatpush.bf16.msra.mxu0 0
    %243 = vmatpush.bf16.msra.mxu0 0
    %244 = vmatpush.bf16.msra.mxu0 0
    %245 = vmatpush.bf16.msra.mxu0 0
    %246 = vmatpush.bf16.msra.mxu0 0
    %247 = vmatpush.bf16.msra.mxu0 0
    %248 = vmatpush.bf16.msra.mxu0 %v197
    %249 = vmatmul.bf16.gmra.mxu0 %v184
    %v250 = vpop.f32.mrf.mxu0
    %v251 = vadd.f32 %v162, %v250
    %v252 = vpop.f32.mrf.mxu0
    %v253 = vadd.f32 %v164, %v252
    %254 = vdwg.mxu0
    %v255 = vld [vmem:[#allocation6] sm:$0xf]
    %v257 = vperm.slane %v255, 0
    %v258 = vperm.slane %v255, 1
    %v259 = vperm.slane %v255, 2
    %v260 = vperm.slane %v255, 3
    %v265 = vadd.f32 %v209, %v257
    %v266 = vadd.f32 %v223, %v258
    %v267 = vadd.f32 %v237, %v259
    %v268 = vadd.f32 %v251, %v260
    %v269 = vadd.f32 %v211, %v257
    %v270 = vadd.f32 %v225, %v258
    %v271 = vadd.f32 %v239, %v259
    %v272 = vadd.f32 %v253, %v260
    %v273 = vmax.f32 %v265, 0.0
    %v274 = vmax.f32 %v266, 0.0
    %v275 = vmax.f32 %v267, 0.0
    %v276 = vmax.f32 %v268, 0.0
    %v277 = vmax.f32 %v269, 0.0
    %v278 = vmax.f32 %v270, 0.0
    %v279 = vmax.f32 %v271, 0.0
    %v280 = vmax.f32 %v272, 0.0
    %v281 = vpack.c.bf16 %v277, %v273
    %v282 = vpack.c.bf16 %v278, %v274
    %v283 = vpack.c.bf16 %v279, %v275
    %v284 = vpack.c.bf16 %v280, %v276
    %v285 = vld [vmem:[#allocation8] sm:$0xff]
    %v286 = vld [vmem:[#allocation8 + $0x8] sm:$0xff]
    %v287 = vld [vmem:[#allocation8 + $0x10] sm:$0xff]
    %v288 = vld [vmem:[#allocation8 + $0x18] sm:$0xff]
    %v289 = vld [vmem:[#allocation8 + $0x20] sm:$0xff]
    %v290 = vld [vmem:[#allocation8 + $0x28] sm:$0xff]
    %v291 = vld [vmem:[#allocation8 + $0x30] sm:$0xff]
    %v292 = vld [vmem:[#allocation8 + $0x38] sm:$0xff]
    %v293 = vld [vmem:[#allocation8 + $0x40] sm:$0xff]
    %v294 = vld [vmem:[#allocation8 + $0x48] sm:$0xff]
    %v295 = vld [vmem:[#allocation8 + $0x50] sm:$0xff]
    %v296 = vld [vmem:[#allocation8 + $0x58] sm:$0xff]
    %v297 = vld [vmem:[#allocation8 + $0x60] sm:$0xff]
    %v298 = vld [vmem:[#allocation8 + $0x68] sm:$0xff]
    %v299 = vld [vmem:[#allocation8 + $0x70] sm:$0xff]
    %v300 = vld [vmem:[#allocation8 + $0x78] sm:$0xff]
    %v301 = vld [vmem:[#allocation8 + $0x80] sm:$0xff]
    %v302 = vld [vmem:[#allocation8 + $0x88] sm:$0xff]
    %v303 = vld [vmem:[#allocation8 + $0x90] sm:$0xff]
    %v304 = vld [vmem:[#allocation8 + $0x98] sm:$0xff]
    %v305 = vld [vmem:[#allocation8 + $0xa0] sm:$0xff]
    %v306 = vld [vmem:[#allocation8 + $0xa8] sm:$0xff]
    %v307 = vld [vmem:[#allocation8 + $0xb0] sm:$0xff]
    %v308 = vld [vmem:[#allocation8 + $0xb8] sm:$0xff]
    %v309 = vld [vmem:[#allocation8 + $0xc0] sm:$0xff]
    %v310 = vld [vmem:[#allocation8 + $0xc8] sm:$0xff]
    %v311 = vld [vmem:[#allocation8 + $0xd0] sm:$0xff]
    %v312 = vld [vmem:[#allocation8 + $0xd8] sm:$0xff]
    %v313 = vld [vmem:[#allocation8 + $0xe0] sm:$0xff]
    %v314 = vld [vmem:[#allocation8 + $0xe8] sm:$0xff]
    %v315 = vld [vmem:[#allocation8 + $0xf0] sm:$0xff]
    %v316 = vld [vmem:[#allocation8 + $0xf8] sm:$0xff]
    %v317 = vld [vmem:[#allocation8 + $0x100] sm:$0xff]
    %v318 = vld [vmem:[#allocation8 + $0x108] sm:$0xff]
    %v319 = vld [vmem:[#allocation8 + $0x110] sm:$0xff]
    %v320 = vld [vmem:[#allocation8 + $0x118] sm:$0xff]
    %v321 = vld [vmem:[#allocation8 + $0x120] sm:$0xff]
    %v322 = vld [vmem:[#allocation8 + $0x128] sm:$0xff]
    %v323 = vld [vmem:[#allocation8 + $0x130] sm:$0xff]
    %v324 = vld [vmem:[#allocation8 + $0x138] sm:$0xff]
    %v325 = vld [vmem:[#allocation8 + $0x140] sm:$0xff]
    %v326 = vld [vmem:[#allocation8 + $0x148] sm:$0xff]
    %v327 = vld [vmem:[#allocation8 + $0x150] sm:$0xff]
    %v328 = vld [vmem:[#allocation8 + $0x158] sm:$0xff]
    %v329 = vld [vmem:[#allocation8 + $0x160] sm:$0xff]
    %v330 = vld [vmem:[#allocation8 + $0x168] sm:$0xff]
    %v331 = vld [vmem:[#allocation8 + $0x170] sm:$0xff]
    %v332 = vld [vmem:[#allocation8 + $0x178] sm:$0xff]
    %v333 = vld [vmem:[#allocation8 + $0x180] sm:$0xff]
    %v334 = vld [vmem:[#allocation8 + $0x188] sm:$0xff]
    %v335 = vld [vmem:[#allocation8 + $0x190] sm:$0xff]
    %v336 = vld [vmem:[#allocation8 + $0x198] sm:$0xff]
    %v337 = vld [vmem:[#allocation8 + $0x1a0] sm:$0xff]
    %v338 = vld [vmem:[#allocation8 + $0x1a8] sm:$0xff]
    %v339 = vld [vmem:[#allocation8 + $0x1b0] sm:$0xff]
    %v340 = vld [vmem:[#allocation8 + $0x1b8] sm:$0xff]
    %v341 = vld [vmem:[#allocation8 + $0x1c0] sm:$0xff]
    %v342 = vld [vmem:[#allocation8 + $0x1c8] sm:$0xff]
    %v343 = vld [vmem:[#allocation8 + $0x1d0] sm:$0xff]
    %v344 = vld [vmem:[#allocation8 + $0x1d8] sm:$0xff]
    %v345 = vld [vmem:[#allocation8 + $0x1e0] sm:$0xff]
    %v346 = vld [vmem:[#allocation8 + $0x1e8] sm:$0xff]
    %v347 = vld [vmem:[#allocation8 + $0x1f0] sm:$0xff]
    %v348 = vld [vmem:[#allocation8 + $0x1f8] sm:$0xff]
    %v349 = vld [vmem:[%s6] sm:$0x3]
    %v351 = vperm.slane %v349, 0
    %v352 = vperm.slane %v349, 1
    %v419 = vunpack.c.l.b16 %v285
    %v420 = vunpack.c.h.b16 %v285
    %v421 = vunpack.c.l.b16 %v286
    %v422 = vunpack.c.h.b16 %v286
    %v423 = vunpack.c.l.b16 %v287
    %v424 = vunpack.c.h.b16 %v287
    %v425 = vunpack.c.l.b16 %v288
    %v426 = vunpack.c.h.b16 %v288
    %v427 = vunpack.c.l.b16 %v289
    %v428 = vunpack.c.h.b16 %v289
    %v429 = vunpack.c.l.b16 %v290
    %v430 = vunpack.c.h.b16 %v290
    %v431 = vunpack.c.l.b16 %v291
    %v432 = vunpack.c.h.b16 %v291
    %v433 = vunpack.c.l.b16 %v292
    %v434 = vunpack.c.h.b16 %v292
    %v435 = vunpack.c.l.b16 %v293
    %v436 = vunpack.c.h.b16 %v293
    %v437 = vunpack.c.l.b16 %v294
    %v438 = vunpack.c.h.b16 %v294
    %v439 = vunpack.c.l.b16 %v295
    %v440 = vunpack.c.h.b16 %v295
    %v441 = vunpack.c.l.b16 %v296
    %v442 = vunpack.c.h.b16 %v296
    %v443 = vunpack.c.l.b16 %v297
    %v444 = vunpack.c.h.b16 %v297
    %v445 = vunpack.c.l.b16 %v298
    %v446 = vunpack.c.h.b16 %v298
    %v447 = vunpack.c.l.b16 %v299
    %v448 = vunpack.c.h.b16 %v299
    %v449 = vunpack.c.l.b16 %v300
    %v450 = vunpack.c.h.b16 %v300
    %v451 = vunpack.c.l.b16 %v301
    %v452 = vunpack.c.h.b16 %v301
    %v453 = vunpack.c.l.b16 %v302
    %v454 = vunpack.c.h.b16 %v302
    %v455 = vunpack.c.l.b16 %v303
    %v456 = vunpack.c.h.b16 %v303
    %v457 = vunpack.c.l.b16 %v304
    %v458 = vunpack.c.h.b16 %v304
    %v459 = vunpack.c.l.b16 %v305
    %v460 = vunpack.c.h.b16 %v305
    %v461 = vunpack.c.l.b16 %v306
    %v462 = vunpack.c.h.b16 %v306
    %v463 = vunpack.c.l.b16 %v307
    %v464 = vunpack.c.h.b16 %v307
    %v465 = vunpack.c.l.b16 %v308
    %v466 = vunpack.c.h.b16 %v308
    %v467 = vunpack.c.l.b16 %v309
    %v468 = vunpack.c.h.b16 %v309
    %v469 = vunpack.c.l.b16 %v310
    %v470 = vunpack.c.h.b16 %v310
    %v471 = vunpack.c.l.b16 %v311
    %v472 = vunpack.c.h.b16 %v311
    %v473 = vunpack.c.l.b16 %v312
    %v474 = vunpack.c.h.b16 %v312
    %v475 = vunpack.c.l.b16 %v313
    %v476 = vunpack.c.h.b16 %v313
    %v477 = vunpack.c.l.b16 %v314
    %v478 = vunpack.c.h.b16 %v314
    %v479 = vunpack.c.l.b16 %v315
    %v480 = vunpack.c.h.b16 %v315
    %v481 = vunpack.c.l.b16 %v316
    %v482 = vunpack.c.h.b16 %v316
    %v483 = vunpack.c.l.b16 %v317
    %v484 = vunpack.c.h.b16 %v317
    %v485 = vunpack.c.l.b16 %v318
    %v486 = vunpack.c.h.b16 %v318
    %v487 = vunpack.c.l.b16 %v319
    %v488 = vunpack.c.h.b16 %v319
    %v489 = vunpack.c.l.b16 %v320
    %v490 = vunpack.c.h.b16 %v320
    %v491 = vunpack.c.l.b16 %v321
    %v492 = vunpack.c.h.b16 %v321
    %v493 = vunpack.c.l.b16 %v322
    %v494 = vunpack.c.h.b16 %v322
    %v495 = vunpack.c.l.b16 %v323
    %v496 = vunpack.c.h.b16 %v323
    %v497 = vunpack.c.l.b16 %v324
    %v498 = vunpack.c.h.b16 %v324
    %v499 = vunpack.c.l.b16 %v325
    %v500 = vunpack.c.h.b16 %v325
    %v501 = vunpack.c.l.b16 %v326
    %v502 = vunpack.c.h.b16 %v326
    %v503 = vunpack.c.l.b16 %v327
    %v504 = vunpack.c.h.b16 %v327
    %v505 = vunpack.c.l.b16 %v328
    %v506 = vunpack.c.h.b16 %v328
    %v507 = vunpack.c.l.b16 %v329
    %v508 = vunpack.c.h.b16 %v329
    %v509 = vunpack.c.l.b16 %v330
    %v510 = vunpack.c.h.b16 %v330
    %v511 = vunpack.c.l.b16 %v331
    %v512 = vunpack.c.h.b16 %v331
    %v513 = vunpack.c.l.b16 %v332
    %v514 = vunpack.c.h.b16 %v332
    %v515 = vunpack.c.l.b16 %v333
    %v516 = vunpack.c.h.b16 %v333
    %v517 = vunpack.c.l.b16 %v334
    %v518 = vunpack.c.h.b16 %v334
    %v519 = vunpack.c.l.b16 %v335
    %v520 = vunpack.c.h.b16 %v335
    %v521 = vunpack.c.l.b16 %v336
    %v522 = vunpack.c.h.b16 %v336
    %v523 = vunpack.c.l.b16 %v337
    %v524 = vunpack.c.h.b16 %v337
    %v525 = vunpack.c.l.b16 %v338
    %v526 = vunpack.c.h.b16 %v338
    %v527 = vunpack.c.l.b16 %v339
    %v528 = vunpack.c.h.b16 %v339
    %v529 = vunpack.c.l.b16 %v340
    %v530 = vunpack.c.h.b16 %v340
    %v531 = vunpack.c.l.b16 %v341
    %v532 = vunpack.c.h.b16 %v341
    %v533 = vunpack.c.l.b16 %v342
    %v534 = vunpack.c.h.b16 %v342
    %v535 = vunpack.c.l.b16 %v343
    %v536 = vunpack.c.h.b16 %v343
    %v537 = vunpack.c.l.b16 %v344
    %v538 = vunpack.c.h.b16 %v344
    %v539 = vunpack.c.l.b16 %v345
    %v540 = vunpack.c.h.b16 %v345
    %v541 = vunpack.c.l.b16 %v346
    %v542 = vunpack.c.h.b16 %v346
    %v543 = vunpack.c.l.b16 %v347
    %v544 = vunpack.c.h.b16 %v347
    %v545 = vunpack.c.l.b16 %v348
    %v546 = vunpack.c.h.b16 %v348
    %v547 = vpack.c.b16 %v421, %v419
    %v548 = vpack.c.b16 %v422, %v420
    %v549 = vpack.c.b16 %v425, %v423
    %v550 = vpack.c.b16 %v426, %v424
    %v551 = vpack.c.b16 %v429, %v427
    %v552 = vpack.c.b16 %v430, %v428
    %v553 = vpack.c.b16 %v433, %v431
    %v554 = vpack.c.b16 %v434, %v432
    %v555 = vpack.c.b16 %v437, %v435
    %v556 = vpack.c.b16 %v438, %v436
    %v557 = vpack.c.b16 %v441, %v439
    %v558 = vpack.c.b16 %v442, %v440
    %v559 = vpack.c.b16 %v445, %v443
    %v560 = vpack.c.b16 %v446, %v444
    %v561 = vpack.c.b16 %v449, %v447
    %v562 = vpack.c.b16 %v450, %v448
    %v563 = vpack.c.b16 %v453, %v451
    %v564 = vpack.c.b16 %v454, %v452
    %v565 = vpack.c.b16 %v457, %v455
    %v566 = vpack.c.b16 %v458, %v456
    %v567 = vpack.c.b16 %v461, %v459
    %v568 = vpack.c.b16 %v462, %v460
    %v569 = vpack.c.b16 %v465, %v463
    %v570 = vpack.c.b16 %v466, %v464
    %v571 = vpack.c.b16 %v469, %v467
    %v572 = vpack.c.b16 %v470, %v468
    %v573 = vpack.c.b16 %v473, %v471
    %v574 = vpack.c.b16 %v474, %v472
    %v575 = vpack.c.b16 %v477, %v475
    %v576 = vpack.c.b16 %v478, %v476
    %v577 = vpack.c.b16 %v481, %v479
    %v578 = vpack.c.b16 %v482, %v480
    %v579 = vpack.c.b16 %v485, %v483
    %v580 = vpack.c.b16 %v486, %v484
    %v581 = vpack.c.b16 %v489, %v487
    %v582 = vpack.c.b16 %v490, %v488
    %v583 = vpack.c.b16 %v493, %v491
    %v584 = vpack.c.b16 %v494, %v492
    %v585 = vpack.c.b16 %v497, %v495
    %v586 = vpack.c.b16 %v498, %v496
    %v587 = vpack.c.b16 %v501, %v499
    %v588 = vpack.c.b16 %v502, %v500
    %v589 = vpack.c.b16 %v505, %v503
    %v590 = vpack.c.b16 %v506, %v504
    %v591 = vpack.c.b16 %v509, %v507
    %v592 = vpack.c.b16 %v510, %v508
    %v593 = vpack.c.b16 %v513, %v511
    %v594 = vpack.c.b16 %v514, %v512
    %v595 = vpack.c.b16 %v517, %v515
    %v596 = vpack.c.b16 %v518, %v516
    %v597 = vpack.c.b16 %v521, %v519
    %v598 = vpack.c.b16 %v522, %v520
    %v599 = vpack.c.b16 %v525, %v523
    %v600 = vpack.c.b16 %v526, %v524
    %v601 = vpack.c.b16 %v529, %v527
    %v602 = vpack.c.b16 %v530, %v528
    %v603 = vpack.c.b16 %v533, %v531
    %v604 = vpack.c.b16 %v534, %v532
    %v605 = vpack.c.b16 %v537, %v535
    %v606 = vpack.c.b16 %v538, %v536
    %v607 = vpack.c.b16 %v541, %v539
    %v608 = vpack.c.b16 %v542, %v540
    %v609 = vpack.c.b16 %v545, %v543
    %v610 = vpack.c.b16 %v546, %v544
    %675 = vmatpush.bf16.msra.mxu0 %v561
    %676 = vmatpush.bf16.msra.mxu0 %v559
    %677 = vmatpush.bf16.msra.mxu0 %v557
    %678 = vmatpush.bf16.msra.mxu0 %v555
    %679 = vmatpush.bf16.msra.mxu0 %v553
    %680 = vmatpush.bf16.msra.mxu0 %v551
    %681 = vmatpush.bf16.msra.mxu0 %v549
    %682 = vmatpush.bf16.msra.mxu0 %v547
    %683 = vmatmul.bf16.gmra.mxu0 %v281
    %v684 = vpop.f32.mrf.mxu0
    %v685 = vadd.f32 %v351, %v684
    %v686 = vpop.f32.mrf.mxu0
    %v687 = vadd.f32 %v351, %v686
    %688 = vdwg.mxu0
    %689 = vmatpush.bf16.msra.mxu0 %v577
    %690 = vmatpush.bf16.msra.mxu0 %v575
    %691 = vmatpush.bf16.msra.mxu0 %v573
    %692 = vmatpush.bf16.msra.mxu0 %v571
    %693 = vmatpush.bf16.msra.mxu0 %v569
    %694 = vmatpush.bf16.msra.mxu0 %v567
    %695 = vmatpush.bf16.msra.mxu0 %v565
    %696 = vmatpush.bf16.msra.mxu0 %v563
    %697 = vmatmul.bf16.gmra.mxu0 %v282
    %v698 = vpop.f32.mrf.mxu0
    %v699 = vadd.f32 %v685, %v698
    %v700 = vpop.f32.mrf.mxu0
    %v701 = vadd.f32 %v687, %v700
    %702 = vdwg.mxu0
    %703 = vmatpush.bf16.msra.mxu0 %v593
    %704 = vmatpush.bf16.msra.mxu0 %v591
    %705 = vmatpush.bf16.msra.mxu0 %v589
    %706 = vmatpush.bf16.msra.mxu0 %v587
    %707 = vmatpush.bf16.msra.mxu0 %v585
    %708 = vmatpush.bf16.msra.mxu0 %v583
    %709 = vmatpush.bf16.msra.mxu0 %v581
    %710 = vmatpush.bf16.msra.mxu0 %v579
    %711 = vmatmul.bf16.gmra.mxu0 %v283
    %v712 = vpop.f32.mrf.mxu0
    %v713 = vadd.f32 %v699, %v712
    %v714 = vpop.f32.mrf.mxu0
    %v715 = vadd.f32 %v701, %v714
    %716 = vdwg.mxu0
    %717 = vmatpush.bf16.msra.mxu0 %v609
    %718 = vmatpush.bf16.msra.mxu0 %v607
    %719 = vmatpush.bf16.msra.mxu0 %v605
    %720 = vmatpush.bf16.msra.mxu0 %v603
    %721 = vmatpush.bf16.msra.mxu0 %v601
    %722 = vmatpush.bf16.msra.mxu0 %v599
    %723 = vmatpush.bf16.msra.mxu0 %v597
    %724 = vmatpush.bf16.msra.mxu0 %v595
    %725 = vmatmul.bf16.gmra.mxu0 %v284
    %v726 = vpop.f32.mrf.mxu0
    %v727 = vadd.f32 %v713, %v726
    %v728 = vpop.f32.mrf.mxu0
    %v729 = vadd.f32 %v715, %v728
    %730 = vdwg.mxu0
    %731 = vmatpush.bf16.msra.mxu0 %v562
    %732 = vmatpush.bf16.msra.mxu0 %v560
    %733 = vmatpush.bf16.msra.mxu0 %v558
    %734 = vmatpush.bf16.msra.mxu0 %v556
    %735 = vmatpush.bf16.msra.mxu0 %v554
    %736 = vmatpush.bf16.msra.mxu0 %v552
    %737 = vmatpush.bf16.msra.mxu0 %v550
    %738 = vmatpush.bf16.msra.mxu0 %v548
    %739 = vmatmul.bf16.gmra.mxu0 %v281
    %v740 = vpop.f32.mrf.mxu0
    %v741 = vadd.f32 %v352, %v740
    %v742 = vpop.f32.mrf.mxu0
    %v743 = vadd.f32 %v352, %v742
    %744 = vdwg.mxu0
    %745 = vmatpush.bf16.msra.mxu0 %v578
    %746 = vmatpush.bf16.msra.mxu0 %v576
    %747 = vmatpush.bf16.msra.mxu0 %v574
    %748 = vmatpush.bf16.msra.mxu0 %v572
    %749 = vmatpush.bf16.msra.mxu0 %v570
    %750 = vmatpush.bf16.msra.mxu0 %v568
    %751 = vmatpush.bf16.msra.mxu0 %v566
    %752 = vmatpush.bf16.msra.mxu0 %v564
    %753 = vmatmul.bf16.gmra.mxu0 %v282
    %v754 = vpop.f32.mrf.mxu0
    %v755 = vadd.f32 %v741, %v754
    %v756 = vpop.f32.mrf.mxu0
    %v757 = vadd.f32 %v743, %v756
    %758 = vdwg.mxu0
    %759 = vmatpush.bf16.msra.mxu0 %v594
    %760 = vmatpush.bf16.msra.mxu0 %v592
    %761 = vmatpush.bf16.msra.mxu0 %v590
    %762 = vmatpush.bf16.msra.mxu0 %v588
    %763 = vmatpush.bf16.msra.mxu0 %v586
    %764 = vmatpush.bf16.msra.mxu0 %v584
    %765 = vmatpush.bf16.msra.mxu0 %v582
    %766 = vmatpush.bf16.msra.mxu0 %v580
    %767 = vmatmul.bf16.gmra.mxu0 %v283
    %v768 = vpop.f32.mrf.mxu0
    %v769 = vadd.f32 %v755, %v768
    %v770 = vpop.f32.mrf.mxu0
    %v771 = vadd.f32 %v757, %v770
    %772 = vdwg.mxu0
    %773 = vmatpush.bf16.msra.mxu0 %v610
    %774 = vmatpush.bf16.msra.mxu0 %v608
    %775 = vmatpush.bf16.msra.mxu0 %v606
    %776 = vmatpush.bf16.msra.mxu0 %v604
    %777 = vmatpush.bf16.msra.mxu0 %v602
    %778 = vmatpush.bf16.msra.mxu0 %v600
    %779 = vmatpush.bf16.msra.mxu0 %v598
    %780 = vmatpush.bf16.msra.mxu0 %v596
    %781 = vmatmul.bf16.gmra.mxu0 %v284
    %v782 = vpop.f32.mrf.mxu0
    %v783 = vadd.f32 %v769, %v782
    %v784 = vpop.f32.mrf.mxu0
    %v785 = vadd.f32 %v771, %v784
    %786 = vdwg.mxu0
    %v787 = vmax.f32 %v727, 0.0
    %v788 = vmax.f32 %v783, 0.0
    %v789 = vmax.f32 %v729, 0.0
    %v790 = vmax.f32 %v785, 0.0
    %v791 = vld [vmem:[%s7] sm:$0x3]
    %v793 = vperm.slane %v791, 0
    %v794 = vperm.slane %v791, 1
    %v797 = vmul.f32 %v787, %v793
    %v798 = vmul.f32 %v788, %v794
    %v799 = vmul.f32 %v789, %v793
    %v800 = vmul.f32 %v790, %v794
    %v801 = vadd.f32 %v797, %v798
    %802 = vadd.xlane.f32.xlu0 %v801
    %v803 = vpop.xlane.xlu0 %802
    %v804 = vadd.f32 %v799, %v800
    %805 = vadd.xlane.f32.xlu0 %v804
    %v806 = vpop.xlane.xlu0 %805
    %s807 = sld [smem:[#allocation2]]
    %v808 = vstv %s807
    %v809 = vadd.f32 %v803, %v808
    %v810 = vadd.f32 %v806, %v808
    %v813 = vlaneseq
    %v814 = vand.u32 %v813, 127
    %v815 = vperm.slane %v809, %v814
    %v816 = vadd.s32 %v814, 4294967288
    %v817 = vperm.slane %v810, %v816
    %vm818 = vcmask 130112
    %v819 = vsel %vm818, %v817, %v815
    %vm821 = vcmask 122880
    %822 = vst.msk [vmem:[#allocation9] sm:$0x1] %vm821, %v819
    // Predicated region
    $region50: #{tpu_custom_call.1} parent=1 // pred_check
      _
    $region51: #{tpu_custom_call.1} parent=1 // pred_check_branch
      %824 = sbr.rel (0) target = $region53
    $region52: #{tpu_custom_call.1} parent=1 // pred_region
      %826 = vsyncadd [#allocation5], 0
      %s828 = sshll.u32 [#allocation9], 4
      %s829 = int_to_ptr.vmem [resolvable:$true] %s828
      %s830 = sshll.u32 %s9, 4
      %s831 = int_to_ptr.hbm [resolvable:$true] %s830
      %833 = dma.vmem_to_hbm [thread:$0]  %s829, 16, %s831, [#allocation5]
    $region53: #{tpu_custom_call.1} parent=1 // pred_fallthru
      _
    // Predicated region
    $region54: #{tpu_custom_call.1} parent=1 // pred_check
      _
    $region55: #{tpu_custom_call.1} parent=1 // pred_check_branch
      %835 = sbr.rel (0) target = $region57
    $region56: #{tpu_custom_call.1} parent=1 // pred_region
      %837 = dma.done [#allocation5], 16
    $region57: #{tpu_custom_call.1} parent=1 // pred_fallthru
      _
    %838 = vsyncpa [#allocation4], 1
    %839 = vsyncpa [#allocation7], 1
    %840 = vsyncpa [#allocation5], 1

</llo_original>
